<compile_context>
chip_gen: v5e
topology: v5e:2x2
jax: 0.10.0
libtpu: 0.0.40
codegen_flags: <defaults>
</compile_context>

<pallas_src>
import functools

import jax
import jax.numpy as jnp
from jax import lax
from jax.experimental import pallas as pl
from jax.experimental.pallas import tpu as pltpu

LN_EPS = 1e-5


def _project_rows(xs, wgs, csum, bias, inv_c8, out_dtype):
    """LayerNorm(concat(corners)) @ W for one 2D block of output rows.

    xs  : 4 arrays (rows, 2C), input dtype -- the (dh, dw) corner slabs.
    wgs : 4 arrays (2C, 4C),  input dtype -- gamma-folded weight groups.
    csum, bias : (1, 4C) f32 -- gamma @ W and beta @ W (LayerNorm fold vectors).
    """
    xf = [v.astype(jnp.float32) for v in xs]
    mean = (xf[0] + xf[1] + xf[2] + xf[3]).sum(axis=-1, keepdims=True) * inv_c8
    d2 = (jnp.square(xf[0] - mean) + jnp.square(xf[1] - mean)
          + jnp.square(xf[2] - mean) + jnp.square(xf[3] - mean))
    inv = lax.rsqrt(d2.sum(axis=-1, keepdims=True) * inv_c8 + LN_EPS)   # EUP

    # Projection in the raw input dtype (bf16 stays bf16 on the MXU), f32 accum.
    p = jnp.dot(xs[0], wgs[0], preferred_element_type=jnp.float32)
    p = p + jnp.dot(xs[1], wgs[1], preferred_element_type=jnp.float32)
    p = p + jnp.dot(xs[2], wgs[2], preferred_element_type=jnp.float32)
    p = p + jnp.dot(xs[3], wgs[3], preferred_element_type=jnp.float32)

    # LayerNorm applied post-projection as an exact rank-1 correction.
    return (inv * (p - mean * csum) + bias).astype(out_dtype)


def _patch_merge_kernel(x_ref, w_ref, csum_ref, bias_ref, o_ref, *, fuse_rows):
    # x_ref   : (th, 2, tw, 2, T2, 2C)  rows = (h2-tile, w2-tile, t2); parities
    #                                   (dh, dw) are explicit axes; (dt, c) is lanes.
    # w_ref   : (4, 2C, 4C)             folded weight, group g = dh*2 + dw.
    # csum_ref: (1, 4C) f32             gamma @ W
    # bias_ref: (1, 4C) f32             beta @ W
    # o_ref   : (th, tw*T2, 4C)
    th, _, tw, _, t2, c2 = x_ref.shape
    inv_c8 = 1.0 / float(4 * c2)

    # Tiny operands: load once per grid step (constant index_map -> DMA'd once).
    wgs = (w_ref[0], w_ref[1], w_ref[2], w_ref[3])
    csum = csum_ref[...]
    bias = bias_ref[...]

    for hi in range(th):
        a0 = x_ref[hi, 0]                                   # (tw, 2, T2, 2C) dh=0
        a1 = x_ref[hi, 1]                                   #                 dh=1
        corners = (a0[:, 0], a0[:, 1], a1[:, 0], a1[:, 1])  # each (tw, T2, 2C)

        if fuse_rows:
            # T2 % sublane_tile == 0: collapsing (tw, T2) -> rows is a layout no-op,
            # so all tw*T2 rows go through one set of big MXU matmuls and one dense
            # (rows, 4C) store.
            xs = [c.reshape(tw * t2, c2) for c in corners]
            o_ref[hi] = _project_rows(xs, wgs, csum, bias, inv_c8, o_ref.dtype)
        else:
            # Small / ragged T2 fallback: per-w2 matmuls with T2-row LHS.
            for wv in range(tw):
                xs = [c[wv] for c in corners]                # (T2, 2C)
                o_ref[hi, wv * t2:(wv + 1) * t2] = _project_rows(
                    xs, wgs, csum, bias, inv_c8, o_ref.dtype)


def _divisors(n):
    return [d for d in range(1, n + 1) if n % d == 0]


def _pick_tiles(n_outer, w2, t2, c2, c4, itemsize, fuse_rows,
                target_rows=2048, vmem_budget_bytes=22 << 20, max_unroll=64):
    """Pick (th, tw) with th | n_outer (h2-tile) and tw | W2 (w2-tile)."""

    def pad(n, m):
        return -(-n // m) * m

    def vmem_bytes(th, tw):
        in_b = th * 4 * tw * pad(t2, 8) * pad(c2, 128) * itemsize
        out_b = th * pad(tw * t2, 8) * pad(c4, 128) * itemsize
        w_b = 4 * pad(c2, 8) * pad(c4, 128) * itemsize + 2 * 8 * pad(c4, 128) * 4
        return 2 * (in_b + out_b) + w_b          # double-buffered blocks + params

    # Without row fusion the output block's second-minor dim must equal the full
    # W2*T2 extent, so the whole W2 stays in one block.
    tw_opts = _divisors(w2) if fuse_rows else [w2]
    cands = []
    for tw in tw_opts:
        for th in _divisors(n_outer):
            unroll = th * (1 if fuse_rows else tw)
            if unroll > max_unroll:
                continue
            if vmem_bytes(th, tw) > vmem_budget_bytes:
                continue
            cands.append((th, tw))
    if not cands:                                # degenerate: take the smallest tile
        cands = [(1, min(tw_opts))]

    rows = lambda c: c[0] * c[1] * t2
    steps = lambda c: (n_outer // c[0]) * (w2 // c[1])

    multi = [c for c in cands if steps(c) >= 2]  # keep both TCs busy when possible
    pool = multi if multi else cands
    under = [c for c in pool if rows(c) <= target_rows]
    if under:                                    # biggest tile under the row target
        th, tw = max(under, key=lambda c: (rows(c), c[1]))
    else:
        th, tw = min(pool, key=lambda c: (rows(c), -c[1]))
    return th, tw, vmem_bytes(th, tw)


def patch_merging(x, H, W, T, weight, gamma, beta, *, target_rows=2048):
    """PatchMerging forward.

    x: (B, H*W*T, C).  weight: (8C, 4C) (in, out) = transpose of the PyTorch weight.
    gamma, beta: (8C,) LayerNorm affine.  Returns (B, H/2*W/2*T/2, 4C) in x.dtype.
    """
    B, L, C = x.shape
    assert L == H * W * T, "input feature has wrong size"
    assert H % 2 == 0 and W % 2 == 0 and T % 2 == 0, "H, W, T must be even"
    # TODO(synk): the torch module's odd-size padding branch is unreachable (it sits
    # behind the evenness assert above), so it is intentionally not reproduced.

    H2, W2, T2 = H // 2, W // 2, T // 2
    C2 = 2 * C
    C4 = weight.shape[1]
    f32 = jnp.float32

    wf, gf, bf = weight.astype(f32), gamma.astype(f32), beta.astype(f32)

    # Fold LayerNorm affine into the bias-free projection (trace time, tiny):
    #   LN(x) @ W = inv_std * (x @ (gamma*W) - mean * (gamma @ W)) + beta @ W
    w_fold = gf[:, None] * wf                                    # (8C, 4C)
    # Reorder rows from the torch concat order [x0..x7] to (dh, dw, dt, c) so each
    # (dh, dw) corner consumes one contiguous (dt, c) channel slab of width 2C.
    #   torch corner j -> (dh,dw,dt): 0:(000) 1:(100) 2:(010) 3:(001)
    #                                 4:(110) 5:(011) 6:(101) 7:(111)
    perm = jnp.array([0, 3, 2, 5, 1, 6, 4, 7], dtype=jnp.int32)
    w_groups = w_fold.reshape(8, C, C4)[perm].reshape(4, C2, C4).astype(x.dtype)
    csum = (gf @ wf).reshape(1, C4)                              # (1, 4C) f32
    bias = (bf @ wf).reshape(1, C4)                              # (1, 4C) f32

    # Pure reshape (row-major, no HBM relayout): (b*h2, dh, w2, dw, t2, (dt, c)).
    x6 = x.reshape(B * H2, 2, W2, 2, T2, C2)

    # Collapse (w2, t2) into one matmul-row axis only when it is a layout no-op
    # (T2 a multiple of the native sublane tile for this dtype).
    sublane = 32 // x.dtype.itemsize          # f32: 8, bf16: 16, 8-bit: 32
    fuse_rows = (T2 % sublane == 0)

    n_outer = B * H2
    th, tw, vmem_need = _pick_tiles(n_outer, W2, T2, C2, C4, x.dtype.itemsize,
                                    fuse_rows, target_rows=target_rows)
    grid = (n_outer // th, W2 // tw)

    kernel = functools.partial(_patch_merge_kernel, fuse_rows=fuse_rows)
    out = pl.pallas_call(
        kernel,
        out_shape=jax.ShapeDtypeStruct((B * H2, W2 * T2, C4), x.dtype),
        grid_spec=pltpu.PrefetchScalarGridSpec(
            num_scalar_prefetch=0,
            grid=grid,
            in_specs=[
                # One HBM slab per step: th h2-planes x both h/w parities x tw w2
                # columns x full t2/channels.
                pl.BlockSpec((th, 2, tw, 2, T2, C2),
                             lambda i, j: (i, 0, j, 0, 0, 0)),
                pl.BlockSpec((4, C2, C4), lambda i, j: (0, 0, 0)),
                pl.BlockSpec((1, C4), lambda i, j: (0, 0)),
                pl.BlockSpec((1, C4), lambda i, j: (0, 0)),
            ],
            # Lane-dense output slab: rows are (w2, t2), no in-kernel reshape needed.
            out_specs=pl.BlockSpec((th, tw * T2, C4), lambda i, j: (i, j, 0)),
        ),
        compiler_params=pltpu.CompilerParams(
            dimension_semantics=("parallel", "parallel"),
            vmem_limit_bytes=max(32 << 20, int(vmem_need * 1.25)),
        ),
    )(x6, w_groups, csum, bias)

    return out.reshape(B, H2 * W2 * T2, C4)


def patch_merging_ref(x, H, W, T, weight, gamma, beta):
    B, L, C = x.shape
    xv = x.reshape(B, H, W, T, C)
    xs = [
        xv[:, 0::2, 0::2, 0::2, :], xv[:, 1::2, 0::2, 0::2, :],
        xv[:, 0::2, 1::2, 0::2, :], xv[:, 0::2, 0::2, 1::2, :],
        xv[:, 1::2, 1::2, 0::2, :], xv[:, 0::2, 1::2, 1::2, :],
        xv[:, 1::2, 0::2, 1::2, :], xv[:, 1::2, 1::2, 1::2, :],
    ]
    xc = jnp.concatenate(xs, axis=-1).reshape(B, -1, 8 * C).astype(jnp.float32)
    mean = jnp.mean(xc, axis=-1, keepdims=True)
    var = jnp.mean(jnp.square(xc - mean), axis=-1, keepdims=True)
    xn = (xc - mean) / jnp.sqrt(var + LN_EPS) * gamma + beta
    return jnp.einsum("blk,kn->bln", xn, weight.astype(jnp.float32))


def _run_case(B, H, W, T, C, seed):
    key = jax.random.PRNGKey(seed)
    kx, kw, kg, kb = jax.random.split(key, 4)
    x = jax.random.normal(kx, (B, H * W * T, C), dtype=jnp.float32)
    # Module config: dim = C, reduce_factor = 2 -> Linear(8C, 4C, bias=False).
    weight = jax.random.normal(kw, (8 * C, 4 * C), dtype=jnp.float32) * 0.02
    gamma = 1.0 + 0.01 * jax.random.normal(kg, (8 * C,), dtype=jnp.float32)
    beta = 0.01 * jax.random.normal(kb, (8 * C,), dtype=jnp.float32)

    out = jax.block_until_ready(patch_merging(x, H, W, T, weight, gamma, beta))
    ref = patch_merging_ref(x, H, W, T, weight, gamma, beta)
    assert out.shape == (B, (H // 2) * (W // 2) * (T // 2), 4 * C)
    err = float(jnp.max(jnp.abs(out - ref.astype(out.dtype))))
    assert jnp.allclose(out, ref.astype(out.dtype), atol=2e-4, rtol=2e-4), err


if __name__ == "__main__":
    # Case 1: canonical tiny config (T/2 = 2 -> per-w2 fallback path).
    _run_case(B=2, H=4, W=4, T=4, C=16, seed=0)
    # Case 2: T/2 = 8 -> fused big-matmul path (collapsed (w2, t2) rows).
    _run_case(B=1, H=4, W=4, T=16, C=16, seed=0)
    print("KERNEL_OK")
</pallas_src>

<mosaic_0001>
module attributes {stable_mosaic.version = 11 : i64} {
  func.func @_patch_merge_kernel(%arg0: i32, %arg1: i32, %arg2: memref<2x2x2x2x2x32xf32, #tpu.memory_space<vmem>>, %arg3: memref<4x32x64xf32, #tpu.memory_space<vmem>>, %arg4: memref<1x64xf32, #tpu.memory_space<vmem>>, %arg5: memref<1x64xf32, #tpu.memory_space<vmem>>, %arg6: memref<2x4x64xf32, #tpu.memory_space<vmem>>) attributes {dimension_semantics = [#tpu.dimension_semantics<parallel>, #tpu.dimension_semantics<parallel>], iteration_bounds = array<i64: 2, 1>, scalar_prefetch = 0 : i64, scratch_operands = 0 : i64, tpu.core_type = #tpu.core_type<tc>, window_params = [{transform_indices = @transform_0, window_bounds = array<i64: 2, 2, 2, 2, 2, 32>}, {pipeline_mode = #tpu.pipeline_mode<synchronous>, transform_indices = @transform_1, window_bounds = array<i64: 4, 32, 64>}, {pipeline_mode = #tpu.pipeline_mode<synchronous>, transform_indices = @transform_2, window_bounds = array<i64: 1, 64>}, {pipeline_mode = #tpu.pipeline_mode<synchronous>, transform_indices = @transform_3, window_bounds = array<i64: 1, 64>}, {transform_indices = @transform_4, window_bounds = array<i64: 2, 4, 64>}]} {
    %c0 = arith.constant 0 : index
    %c0_0 = arith.constant 0 : index
    %c0_1 = arith.constant 0 : index
    %0 = vector.load %arg3[%c0, %c0_0, %c0_1] : memref<4x32x64xf32, #tpu.memory_space<vmem>>, vector<1x32x64xf32>
    %1 = vector.shape_cast %0 : vector<1x32x64xf32> to vector<32x64xf32>
    %c1 = arith.constant 1 : index
    %c0_2 = arith.constant 0 : index
    %c0_3 = arith.constant 0 : index
    %2 = vector.load %arg3[%c1, %c0_2, %c0_3] : memref<4x32x64xf32, #tpu.memory_space<vmem>>, vector<1x32x64xf32>
    %3 = vector.shape_cast %2 : vector<1x32x64xf32> to vector<32x64xf32>
    %c2 = arith.constant 2 : index
    %c0_4 = arith.constant 0 : index
    %c0_5 = arith.constant 0 : index
    %4 = vector.load %arg3[%c2, %c0_4, %c0_5] : memref<4x32x64xf32, #tpu.memory_space<vmem>>, vector<1x32x64xf32>
    %5 = vector.shape_cast %4 : vector<1x32x64xf32> to vector<32x64xf32>
    %c3 = arith.constant 3 : index
    %c0_6 = arith.constant 0 : index
    %c0_7 = arith.constant 0 : index
    %6 = vector.load %arg3[%c3, %c0_6, %c0_7] : memref<4x32x64xf32, #tpu.memory_space<vmem>>, vector<1x32x64xf32>
    %7 = vector.shape_cast %6 : vector<1x32x64xf32> to vector<32x64xf32>
    %c0_8 = arith.constant 0 : index
    %c0_9 = arith.constant 0 : index
    %8 = vector.load %arg4[%c0_8, %c0_9] : memref<1x64xf32, #tpu.memory_space<vmem>>, vector<1x64xf32>
    %c0_10 = arith.constant 0 : index
    %c0_11 = arith.constant 0 : index
    %9 = vector.load %arg5[%c0_10, %c0_11] : memref<1x64xf32, #tpu.memory_space<vmem>>, vector<1x64xf32>
    %c0_12 = arith.constant 0 : index
    %c0_13 = arith.constant 0 : index
    %c0_14 = arith.constant 0 : index
    %c0_15 = arith.constant 0 : index
    %c0_16 = arith.constant 0 : index
    %c0_17 = arith.constant 0 : index
    %10 = vector.load %arg2[%c0_12, %c0_13, %c0_14, %c0_15, %c0_16, %c0_17] : memref<2x2x2x2x2x32xf32, #tpu.memory_space<vmem>>, vector<1x1x2x2x2x32xf32>
    %11 = vector.shape_cast %10 : vector<1x1x2x2x2x32xf32> to vector<2x2x2x32xf32>
    %c0_18 = arith.constant 0 : index
    %c1_19 = arith.constant 1 : index
    %c0_20 = arith.constant 0 : index
    %c0_21 = arith.constant 0 : index
    %c0_22 = arith.constant 0 : index
    %c0_23 = arith.constant 0 : index
    %12 = vector.load %arg2[%c0_18, %c1_19, %c0_20, %c0_21, %c0_22, %c0_23] : memref<2x2x2x2x2x32xf32, #tpu.memory_space<vmem>>, vector<1x1x2x2x2x32xf32>
    %13 = vector.shape_cast %12 : vector<1x1x2x2x2x32xf32> to vector<2x2x2x32xf32>
    %14 = vector.extract_strided_slice %11 {offsets = [0, 0, 0, 0], sizes = [2, 1, 2, 32], strides = [1, 1, 1, 1]} : vector<2x2x2x32xf32> to vector<2x1x2x32xf32>
    %15 = vector.shape_cast %14 : vector<2x1x2x32xf32> to vector<2x2x32xf32>
    %16 = vector.extract_strided_slice %11 {offsets = [0, 1, 0, 0], sizes = [2, 1, 2, 32], strides = [1, 1, 1, 1]} : vector<2x2x2x32xf32> to vector<2x1x2x32xf32>
    %17 = vector.shape_cast %16 : vector<2x1x2x32xf32> to vector<2x2x32xf32>
    %18 = vector.extract_strided_slice %13 {offsets = [0, 0, 0, 0], sizes = [2, 1, 2, 32], strides = [1, 1, 1, 1]} : vector<2x2x2x32xf32> to vector<2x1x2x32xf32>
    %19 = vector.shape_cast %18 : vector<2x1x2x32xf32> to vector<2x2x32xf32>
    %20 = vector.extract_strided_slice %13 {offsets = [0, 1, 0, 0], sizes = [2, 1, 2, 32], strides = [1, 1, 1, 1]} : vector<2x2x2x32xf32> to vector<2x1x2x32xf32>
    %21 = vector.shape_cast %20 : vector<2x1x2x32xf32> to vector<2x2x32xf32>
    %22 = vector.extract_strided_slice %15 {offsets = [0, 0, 0], sizes = [1, 2, 32], strides = [1, 1, 1]} : vector<2x2x32xf32> to vector<1x2x32xf32>
    %23 = vector.shape_cast %22 : vector<1x2x32xf32> to vector<2x32xf32>
    %24 = vector.extract_strided_slice %17 {offsets = [0, 0, 0], sizes = [1, 2, 32], strides = [1, 1, 1]} : vector<2x2x32xf32> to vector<1x2x32xf32>
    %25 = vector.shape_cast %24 : vector<1x2x32xf32> to vector<2x32xf32>
    %26 = vector.extract_strided_slice %19 {offsets = [0, 0, 0], sizes = [1, 2, 32], strides = [1, 1, 1]} : vector<2x2x32xf32> to vector<1x2x32xf32>
    %27 = vector.shape_cast %26 : vector<1x2x32xf32> to vector<2x32xf32>
    %28 = vector.extract_strided_slice %21 {offsets = [0, 0, 0], sizes = [1, 2, 32], strides = [1, 1, 1]} : vector<2x2x32xf32> to vector<1x2x32xf32>
    %29 = vector.shape_cast %28 : vector<1x2x32xf32> to vector<2x32xf32>
    %30 = arith.addf %23, %25 : vector<2x32xf32>
    %31 = arith.addf %30, %27 : vector<2x32xf32>
    %32 = arith.addf %31, %29 : vector<2x32xf32>
    %cst = arith.constant dense<0.000000e+00> : vector<2xf32>
    %33 = vector.multi_reduction <add>, %32, %cst [1] : vector<2x32xf32> to vector<2xf32>
    %34 = vector.shape_cast %33 : vector<2xf32> to vector<2x1xf32>
    %cst_24 = arith.constant 7.812500e-03 : f32
    %35 = vector.broadcast %cst_24 : f32 to vector<2x1xf32>
    %36 = arith.mulf %34, %35 : vector<2x1xf32>
    %37 = vector.broadcast %36 : vector<2x1xf32> to vector<2x32xf32>
    %38 = arith.subf %23, %37 : vector<2x32xf32>
    %39 = arith.mulf %38, %38 : vector<2x32xf32>
    %40 = vector.broadcast %36 : vector<2x1xf32> to vector<2x32xf32>
    %41 = arith.subf %25, %40 : vector<2x32xf32>
    %42 = arith.mulf %41, %41 : vector<2x32xf32>
    %43 = arith.addf %39, %42 : vector<2x32xf32>
    %44 = vector.broadcast %36 : vector<2x1xf32> to vector<2x32xf32>
    %45 = arith.subf %27, %44 : vector<2x32xf32>
    %46 = arith.mulf %45, %45 : vector<2x32xf32>
    %47 = arith.addf %43, %46 : vector<2x32xf32>
    %48 = vector.broadcast %36 : vector<2x1xf32> to vector<2x32xf32>
    %49 = arith.subf %29, %48 : vector<2x32xf32>
    %50 = arith.mulf %49, %49 : vector<2x32xf32>
    %51 = arith.addf %47, %50 : vector<2x32xf32>
    %cst_25 = arith.constant dense<0.000000e+00> : vector<2xf32>
    %52 = vector.multi_reduction <add>, %51, %cst_25 [1] : vector<2x32xf32> to vector<2xf32>
    %53 = vector.shape_cast %52 : vector<2xf32> to vector<2x1xf32>
    %cst_26 = arith.constant 7.812500e-03 : f32
    %54 = vector.broadcast %cst_26 : f32 to vector<2x1xf32>
    %55 = arith.mulf %53, %54 : vector<2x1xf32>
    %cst_27 = arith.constant 9.99999974E-6 : f32
    %56 = vector.broadcast %cst_27 : f32 to vector<2x1xf32>
    %57 = arith.addf %55, %56 : vector<2x1xf32>
    %58 = math.rsqrt %57 : vector<2x1xf32>
    %cst_28 = arith.constant dense<0.000000e+00> : vector<2x64xf32>
    %59 = tpu.matmul %23, %1, %cst_28 {dimension_numbers = #tpu.dot_dimension_numbers<[1], [0], [0], [1], [0, 0, 1, 1], [], []>} : vector<2x32xf32>, vector<32x64xf32>, vector<2x64xf32> -> vector<2x64xf32>
    %cst_29 = arith.constant dense<0.000000e+00> : vector<2x64xf32>
    %60 = tpu.matmul %25, %3, %cst_29 {dimension_numbers = #tpu.dot_dimension_numbers<[1], [0], [0], [1], [0, 0, 1, 1], [], []>} : vector<2x32xf32>, vector<32x64xf32>, vector<2x64xf32> -> vector<2x64xf32>
    %61 = arith.addf %59, %60 : vector<2x64xf32>
    %cst_30 = arith.constant dense<0.000000e+00> : vector<2x64xf32>
    %62 = tpu.matmul %27, %5, %cst_30 {dimension_numbers = #tpu.dot_dimension_numbers<[1], [0], [0], [1], [0, 0, 1, 1], [], []>} : vector<2x32xf32>, vector<32x64xf32>, vector<2x64xf32> -> vector<2x64xf32>
    %63 = arith.addf %61, %62 : vector<2x64xf32>
    %cst_31 = arith.constant dense<0.000000e+00> : vector<2x64xf32>
    %64 = tpu.matmul %29, %7, %cst_31 {dimension_numbers = #tpu.dot_dimension_numbers<[1], [0], [0], [1], [0, 0, 1, 1], [], []>} : vector<2x32xf32>, vector<32x64xf32>, vector<2x64xf32> -> vector<2x64xf32>
    %65 = arith.addf %63, %64 : vector<2x64xf32>
    %66 = vector.broadcast %36 : vector<2x1xf32> to vector<2x64xf32>
    %67 = vector.broadcast %8 : vector<1x64xf32> to vector<2x64xf32>
    %68 = arith.mulf %66, %67 : vector<2x64xf32>
    %69 = arith.subf %65, %68 : vector<2x64xf32>
    %70 = vector.broadcast %58 : vector<2x1xf32> to vector<2x64xf32>
    %71 = arith.mulf %70, %69 : vector<2x64xf32>
    %72 = vector.broadcast %9 : vector<1x64xf32> to vector<2x64xf32>
    %73 = arith.addf %71, %72 : vector<2x64xf32>
    %c0_32 = arith.constant 0 : index
    %c0_33 = arith.constant 0 : index
    %c0_34 = arith.constant 0 : index
    %74 = vector.load %arg6[%c0_32, %c0_33, %c0_34] : memref<2x4x64xf32, #tpu.memory_space<vmem>>, vector<1x2x64xf32>
    %75 = vector.shape_cast %74 : vector<1x2x64xf32> to vector<2x64xf32>
    %76 = vector.shape_cast %73 : vector<2x64xf32> to vector<1x2x64xf32>
    tpu.vector_store %arg6[%c0_32, %c0_33, %c0_34], %76 {strides = array<i32>} : memref<2x4x64xf32, #tpu.memory_space<vmem>>, vector<1x2x64xf32>,
    %77 = vector.extract_strided_slice %15 {offsets = [1, 0, 0], sizes = [1, 2, 32], strides = [1, 1, 1]} : vector<2x2x32xf32> to vector<1x2x32xf32>
    %78 = vector.shape_cast %77 : vector<1x2x32xf32> to vector<2x32xf32>
    %79 = vector.extract_strided_slice %17 {offsets = [1, 0, 0], sizes = [1, 2, 32], strides = [1, 1, 1]} : vector<2x2x32xf32> to vector<1x2x32xf32>
    %80 = vector.shape_cast %79 : vector<1x2x32xf32> to vector<2x32xf32>
    %81 = vector.extract_strided_slice %19 {offsets = [1, 0, 0], sizes = [1, 2, 32], strides = [1, 1, 1]} : vector<2x2x32xf32> to vector<1x2x32xf32>
    %82 = vector.shape_cast %81 : vector<1x2x32xf32> to vector<2x32xf32>
    %83 = vector.extract_strided_slice %21 {offsets = [1, 0, 0], sizes = [1, 2, 32], strides = [1, 1, 1]} : vector<2x2x32xf32> to vector<1x2x32xf32>
    %84 = vector.shape_cast %83 : vector<1x2x32xf32> to vector<2x32xf32>
    %85 = arith.addf %78, %80 : vector<2x32xf32>
    %86 = arith.addf %85, %82 : vector<2x32xf32>
    %87 = arith.addf %86, %84 : vector<2x32xf32>
    %cst_35 = arith.constant dense<0.000000e+00> : vector<2xf32>
    %88 = vector.multi_reduction <add>, %87, %cst_35 [1] : vector<2x32xf32> to vector<2xf32>
    %89 = vector.shape_cast %88 : vector<2xf32> to vector<2x1xf32>
    %cst_36 = arith.constant 7.812500e-03 : f32
    %90 = vector.broadcast %cst_36 : f32 to vector<2x1xf32>
    %91 = arith.mulf %89, %90 : vector<2x1xf32>
    %92 = vector.broadcast %91 : vector<2x1xf32> to vector<2x32xf32>
    %93 = arith.subf %78, %92 : vector<2x32xf32>
    %94 = arith.mulf %93, %93 : vector<2x32xf32>
    %95 = vector.broadcast %91 : vector<2x1xf32> to vector<2x32xf32>
    %96 = arith.subf %80, %95 : vector<2x32xf32>
    %97 = arith.mulf %96, %96 : vector<2x32xf32>
    %98 = arith.addf %94, %97 : vector<2x32xf32>
    %99 = vector.broadcast %91 : vector<2x1xf32> to vector<2x32xf32>
    %100 = arith.subf %82, %99 : vector<2x32xf32>
    %101 = arith.mulf %100, %100 : vector<2x32xf32>
    %102 = arith.addf %98, %101 : vector<2x32xf32>
    %103 = vector.broadcast %91 : vector<2x1xf32> to vector<2x32xf32>
    %104 = arith.subf %84, %103 : vector<2x32xf32>
    %105 = arith.mulf %104, %104 : vector<2x32xf32>
    %106 = arith.addf %102, %105 : vector<2x32xf32>
    %cst_37 = arith.constant dense<0.000000e+00> : vector<2xf32>
    %107 = vector.multi_reduction <add>, %106, %cst_37 [1] : vector<2x32xf32> to vector<2xf32>
    %108 = vector.shape_cast %107 : vector<2xf32> to vector<2x1xf32>
    %cst_38 = arith.constant 7.812500e-03 : f32
    %109 = vector.broadcast %cst_38 : f32 to vector<2x1xf32>
    %110 = arith.mulf %108, %109 : vector<2x1xf32>
    %cst_39 = arith.constant 9.99999974E-6 : f32
    %111 = vector.broadcast %cst_39 : f32 to vector<2x1xf32>
    %112 = arith.addf %110, %111 : vector<2x1xf32>
    %113 = math.rsqrt %112 : vector<2x1xf32>
    %cst_40 = arith.constant dense<0.000000e+00> : vector<2x64xf32>
    %114 = tpu.matmul %78, %1, %cst_40 {dimension_numbers = #tpu.dot_dimension_numbers<[1], [0], [0], [1], [0, 0, 1, 1], [], []>} : vector<2x32xf32>, vector<32x64xf32>, vector<2x64xf32> -> vector<2x64xf32>
    %cst_41 = arith.constant dense<0.000000e+00> : vector<2x64xf32>
    %115 = tpu.matmul %80, %3, %cst_41 {dimension_numbers = #tpu.dot_dimension_numbers<[1], [0], [0], [1], [0, 0, 1, 1], [], []>} : vector<2x32xf32>, vector<32x64xf32>, vector<2x64xf32> -> vector<2x64xf32>
    %116 = arith.addf %114, %115 : vector<2x64xf32>
    %cst_42 = arith.constant dense<0.000000e+00> : vector<2x64xf32>
    %117 = tpu.matmul %82, %5, %cst_42 {dimension_numbers = #tpu.dot_dimension_numbers<[1], [0], [0], [1], [0, 0, 1, 1], [], []>} : vector<2x32xf32>, vector<32x64xf32>, vector<2x64xf32> -> vector<2x64xf32>
    %118 = arith.addf %116, %117 : vector<2x64xf32>
    %cst_43 = arith.constant dense<0.000000e+00> : vector<2x64xf32>
    %119 = tpu.matmul %84, %7, %cst_43 {dimension_numbers = #tpu.dot_dimension_numbers<[1], [0], [0], [1], [0, 0, 1, 1], [], []>} : vector<2x32xf32>, vector<32x64xf32>, vector<2x64xf32> -> vector<2x64xf32>
    %120 = arith.addf %118, %119 : vector<2x64xf32>
    %121 = vector.broadcast %91 : vector<2x1xf32> to vector<2x64xf32>
    %122 = vector.broadcast %8 : vector<1x64xf32> to vector<2x64xf32>
    %123 = arith.mulf %121, %122 : vector<2x64xf32>
    %124 = arith.subf %120, %123 : vector<2x64xf32>
    %125 = vector.broadcast %113 : vector<2x1xf32> to vector<2x64xf32>
    %126 = arith.mulf %125, %124 : vector<2x64xf32>
    %127 = vector.broadcast %9 : vector<1x64xf32> to vector<2x64xf32>
    %128 = arith.addf %126, %127 : vector<2x64xf32>
    %c0_44 = arith.constant 0 : index
    %c2_45 = arith.constant 2 : index
    %c0_46 = arith.constant 0 : index
    %129 = vector.load %arg6[%c0_44, %c2_45, %c0_46] : memref<2x4x64xf32, #tpu.memory_space<vmem>>, vector<1x2x64xf32>
    %130 = vector.shape_cast %129 : vector<1x2x64xf32> to vector<2x64xf32>
    %131 = vector.shape_cast %128 : vector<2x64xf32> to vector<1x2x64xf32>
    tpu.vector_store %arg6[%c0_44, %c2_45, %c0_46], %131 {strides = array<i32>} : memref<2x4x64xf32, #tpu.memory_space<vmem>>, vector<1x2x64xf32>,
    %c1_47 = arith.constant 1 : index
    %c0_48 = arith.constant 0 : index
    %c0_49 = arith.constant 0 : index
    %c0_50 = arith.constant 0 : index
    %c0_51 = arith.constant 0 : index
    %c0_52 = arith.constant 0 : index
    %132 = vector.load %arg2[%c1_47, %c0_48, %c0_49, %c0_50, %c0_51, %c0_52] : memref<2x2x2x2x2x32xf32, #tpu.memory_space<vmem>>, vector<1x1x2x2x2x32xf32>
    %133 = vector.shape_cast %132 : vector<1x1x2x2x2x32xf32> to vector<2x2x2x32xf32>
    %c1_53 = arith.constant 1 : index
    %c1_54 = arith.constant 1 : index
    %c0_55 = arith.constant 0 : index
    %c0_56 = arith.constant 0 : index
    %c0_57 = arith.constant 0 : index
    %c0_58 = arith.constant 0 : index
    %134 = vector.load %arg2[%c1_53, %c1_54, %c0_55, %c0_56, %c0_57, %c0_58] : memref<2x2x2x2x2x32xf32, #tpu.memory_space<vmem>>, vector<1x1x2x2x2x32xf32>
    %135 = vector.shape_cast %134 : vector<1x1x2x2x2x32xf32> to vector<2x2x2x32xf32>
    %136 = vector.extract_strided_slice %133 {offsets = [0, 0, 0, 0], sizes = [2, 1, 2, 32], strides = [1, 1, 1, 1]} : vector<2x2x2x32xf32> to vector<2x1x2x32xf32>
    %137 = vector.shape_cast %136 : vector<2x1x2x32xf32> to vector<2x2x32xf32>
    %138 = vector.extract_strided_slice %133 {offsets = [0, 1, 0, 0], sizes = [2, 1, 2, 32], strides = [1, 1, 1, 1]} : vector<2x2x2x32xf32> to vector<2x1x2x32xf32>
    %139 = vector.shape_cast %138 : vector<2x1x2x32xf32> to vector<2x2x32xf32>
    %140 = vector.extract_strided_slice %135 {offsets = [0, 0, 0, 0], sizes = [2, 1, 2, 32], strides = [1, 1, 1, 1]} : vector<2x2x2x32xf32> to vector<2x1x2x32xf32>
    %141 = vector.shape_cast %140 : vector<2x1x2x32xf32> to vector<2x2x32xf32>
    %142 = vector.extract_strided_slice %135 {offsets = [0, 1, 0, 0], sizes = [2, 1, 2, 32], strides = [1, 1, 1, 1]} : vector<2x2x2x32xf32> to vector<2x1x2x32xf32>
    %143 = vector.shape_cast %142 : vector<2x1x2x32xf32> to vector<2x2x32xf32>
    %144 = vector.extract_strided_slice %137 {offsets = [0, 0, 0], sizes = [1, 2, 32], strides = [1, 1, 1]} : vector<2x2x32xf32> to vector<1x2x32xf32>
    %145 = vector.shape_cast %144 : vector<1x2x32xf32> to vector<2x32xf32>
    %146 = vector.extract_strided_slice %139 {offsets = [0, 0, 0], sizes = [1, 2, 32], strides = [1, 1, 1]} : vector<2x2x32xf32> to vector<1x2x32xf32>
    %147 = vector.shape_cast %146 : vector<1x2x32xf32> to vector<2x32xf32>
    %148 = vector.extract_strided_slice %141 {offsets = [0, 0, 0], sizes = [1, 2, 32], strides = [1, 1, 1]} : vector<2x2x32xf32> to vector<1x2x32xf32>
    %149 = vector.shape_cast %148 : vector<1x2x32xf32> to vector<2x32xf32>
    %150 = vector.extract_strided_slice %143 {offsets = [0, 0, 0], sizes = [1, 2, 32], strides = [1, 1, 1]} : vector<2x2x32xf32> to vector<1x2x32xf32>
    %151 = vector.shape_cast %150 : vector<1x2x32xf32> to vector<2x32xf32>
    %152 = arith.addf %145, %147 : vector<2x32xf32>
    %153 = arith.addf %152, %149 : vector<2x32xf32>
    %154 = arith.addf %153, %151 : vector<2x32xf32>
    %cst_59 = arith.constant dense<0.000000e+00> : vector<2xf32>
    %155 = vector.multi_reduction <add>, %154, %cst_59 [1] : vector<2x32xf32> to vector<2xf32>
    %156 = vector.shape_cast %155 : vector<2xf32> to vector<2x1xf32>
    %cst_60 = arith.constant 7.812500e-03 : f32
    %157 = vector.broadcast %cst_60 : f32 to vector<2x1xf32>
    %158 = arith.mulf %156, %157 : vector<2x1xf32>
    %159 = vector.broadcast %158 : vector<2x1xf32> to vector<2x32xf32>
    %160 = arith.subf %145, %159 : vector<2x32xf32>
    %161 = arith.mulf %160, %160 : vector<2x32xf32>
    %162 = vector.broadcast %158 : vector<2x1xf32> to vector<2x32xf32>
    %163 = arith.subf %147, %162 : vector<2x32xf32>
    %164 = arith.mulf %163, %163 : vector<2x32xf32>
    %165 = arith.addf %161, %164 : vector<2x32xf32>
    %166 = vector.broadcast %158 : vector<2x1xf32> to vector<2x32xf32>
    %167 = arith.subf %149, %166 : vector<2x32xf32>
    %168 = arith.mulf %167, %167 : vector<2x32xf32>
    %169 = arith.addf %165, %168 : vector<2x32xf32>
    %170 = vector.broadcast %158 : vector<2x1xf32> to vector<2x32xf32>
    %171 = arith.subf %151, %170 : vector<2x32xf32>
    %172 = arith.mulf %171, %171 : vector<2x32xf32>
    %173 = arith.addf %169, %172 : vector<2x32xf32>
    %cst_61 = arith.constant dense<0.000000e+00> : vector<2xf32>
    %174 = vector.multi_reduction <add>, %173, %cst_61 [1] : vector<2x32xf32> to vector<2xf32>
    %175 = vector.shape_cast %174 : vector<2xf32> to vector<2x1xf32>
    %cst_62 = arith.constant 7.812500e-03 : f32
    %176 = vector.broadcast %cst_62 : f32 to vector<2x1xf32>
    %177 = arith.mulf %175, %176 : vector<2x1xf32>
    %cst_63 = arith.constant 9.99999974E-6 : f32
    %178 = vector.broadcast %cst_63 : f32 to vector<2x1xf32>
    %179 = arith.addf %177, %178 : vector<2x1xf32>
    %180 = math.rsqrt %179 : vector<2x1xf32>
    %cst_64 = arith.constant dense<0.000000e+00> : vector<2x64xf32>
    %181 = tpu.matmul %145, %1, %cst_64 {dimension_numbers = #tpu.dot_dimension_numbers<[1], [0], [0], [1], [0, 0, 1, 1], [], []>} : vector<2x32xf32>, vector<32x64xf32>, vector<2x64xf32> -> vector<2x64xf32>
    %cst_65 = arith.constant dense<0.000000e+00> : vector<2x64xf32>
    %182 = tpu.matmul %147, %3, %cst_65 {dimension_numbers = #tpu.dot_dimension_numbers<[1], [0], [0], [1], [0, 0, 1, 1], [], []>} : vector<2x32xf32>, vector<32x64xf32>, vector<2x64xf32> -> vector<2x64xf32>
    %183 = arith.addf %181, %182 : vector<2x64xf32>
    %cst_66 = arith.constant dense<0.000000e+00> : vector<2x64xf32>
    %184 = tpu.matmul %149, %5, %cst_66 {dimension_numbers = #tpu.dot_dimension_numbers<[1], [0], [0], [1], [0, 0, 1, 1], [], []>} : vector<2x32xf32>, vector<32x64xf32>, vector<2x64xf32> -> vector<2x64xf32>
    %185 = arith.addf %183, %184 : vector<2x64xf32>
    %cst_67 = arith.constant dense<0.000000e+00> : vector<2x64xf32>
    %186 = tpu.matmul %151, %7, %cst_67 {dimension_numbers = #tpu.dot_dimension_numbers<[1], [0], [0], [1], [0, 0, 1, 1], [], []>} : vector<2x32xf32>, vector<32x64xf32>, vector<2x64xf32> -> vector<2x64xf32>
    %187 = arith.addf %185, %186 : vector<2x64xf32>
    %188 = vector.broadcast %158 : vector<2x1xf32> to vector<2x64xf32>
    %189 = vector.broadcast %8 : vector<1x64xf32> to vector<2x64xf32>
    %190 = arith.mulf %188, %189 : vector<2x64xf32>
    %191 = arith.subf %187, %190 : vector<2x64xf32>
    %192 = vector.broadcast %180 : vector<2x1xf32> to vector<2x64xf32>
    %193 = arith.mulf %192, %191 : vector<2x64xf32>
    %194 = vector.broadcast %9 : vector<1x64xf32> to vector<2x64xf32>
    %195 = arith.addf %193, %194 : vector<2x64xf32>
    %c1_68 = arith.constant 1 : index
    %c0_69 = arith.constant 0 : index
    %c0_70 = arith.constant 0 : index
    %196 = vector.load %arg6[%c1_68, %c0_69, %c0_70] : memref<2x4x64xf32, #tpu.memory_space<vmem>>, vector<1x2x64xf32>
    %197 = vector.shape_cast %196 : vector<1x2x64xf32> to vector<2x64xf32>
    %198 = vector.shape_cast %195 : vector<2x64xf32> to vector<1x2x64xf32>
    tpu.vector_store %arg6[%c1_68, %c0_69, %c0_70], %198 {strides = array<i32>} : memref<2x4x64xf32, #tpu.memory_space<vmem>>, vector<1x2x64xf32>,
    %199 = vector.extract_strided_slice %137 {offsets = [1, 0, 0], sizes = [1, 2, 32], strides = [1, 1, 1]} : vector<2x2x32xf32> to vector<1x2x32xf32>
    %200 = vector.shape_cast %199 : vector<1x2x32xf32> to vector<2x32xf32>
    %201 = vector.extract_strided_slice %139 {offsets = [1, 0, 0], sizes = [1, 2, 32], strides = [1, 1, 1]} : vector<2x2x32xf32> to vector<1x2x32xf32>
    %202 = vector.shape_cast %201 : vector<1x2x32xf32> to vector<2x32xf32>
    %203 = vector.extract_strided_slice %141 {offsets = [1, 0, 0], sizes = [1, 2, 32], strides = [1, 1, 1]} : vector<2x2x32xf32> to vector<1x2x32xf32>
    %204 = vector.shape_cast %203 : vector<1x2x32xf32> to vector<2x32xf32>
    %205 = vector.extract_strided_slice %143 {offsets = [1, 0, 0], sizes = [1, 2, 32], strides = [1, 1, 1]} : vector<2x2x32xf32> to vector<1x2x32xf32>
    %206 = vector.shape_cast %205 : vector<1x2x32xf32> to vector<2x32xf32>
    %207 = arith.addf %200, %202 : vector<2x32xf32>
    %208 = arith.addf %207, %204 : vector<2x32xf32>
    %209 = arith.addf %208, %206 : vector<2x32xf32>
    %cst_71 = arith.constant dense<0.000000e+00> : vector<2xf32>
    %210 = vector.multi_reduction <add>, %209, %cst_71 [1] : vector<2x32xf32> to vector<2xf32>
    %211 = vector.shape_cast %210 : vector<2xf32> to vector<2x1xf32>
    %cst_72 = arith.constant 7.812500e-03 : f32
    %212 = vector.broadcast %cst_72 : f32 to vector<2x1xf32>
    %213 = arith.mulf %211, %212 : vector<2x1xf32>
    %214 = vector.broadcast %213 : vector<2x1xf32> to vector<2x32xf32>
    %215 = arith.subf %200, %214 : vector<2x32xf32>
    %216 = arith.mulf %215, %215 : vector<2x32xf32>
    %217 = vector.broadcast %213 : vector<2x1xf32> to vector<2x32xf32>
    %218 = arith.subf %202, %217 : vector<2x32xf32>
    %219 = arith.mulf %218, %218 : vector<2x32xf32>
    %220 = arith.addf %216, %219 : vector<2x32xf32>
    %221 = vector.broadcast %213 : vector<2x1xf32> to vector<2x32xf32>
    %222 = arith.subf %204, %221 : vector<2x32xf32>
    %223 = arith.mulf %222, %222 : vector<2x32xf32>
    %224 = arith.addf %220, %223 : vector<2x32xf32>
    %225 = vector.broadcast %213 : vector<2x1xf32> to vector<2x32xf32>
    %226 = arith.subf %206, %225 : vector<2x32xf32>
    %227 = arith.mulf %226, %226 : vector<2x32xf32>
    %228 = arith.addf %224, %227 : vector<2x32xf32>
    %cst_73 = arith.constant dense<0.000000e+00> : vector<2xf32>
    %229 = vector.multi_reduction <add>, %228, %cst_73 [1] : vector<2x32xf32> to vector<2xf32>
    %230 = vector.shape_cast %229 : vector<2xf32> to vector<2x1xf32>
    %cst_74 = arith.constant 7.812500e-03 : f32
    %231 = vector.broadcast %cst_74 : f32 to vector<2x1xf32>
    %232 = arith.mulf %230, %231 : vector<2x1xf32>
    %cst_75 = arith.constant 9.99999974E-6 : f32
    %233 = vector.broadcast %cst_75 : f32 to vector<2x1xf32>
    %234 = arith.addf %232, %233 : vector<2x1xf32>
    %235 = math.rsqrt %234 : vector<2x1xf32>
    %cst_76 = arith.constant dense<0.000000e+00> : vector<2x64xf32>
    %236 = tpu.matmul %200, %1, %cst_76 {dimension_numbers = #tpu.dot_dimension_numbers<[1], [0], [0], [1], [0, 0, 1, 1], [], []>} : vector<2x32xf32>, vector<32x64xf32>, vector<2x64xf32> -> vector<2x64xf32>
    %cst_77 = arith.constant dense<0.000000e+00> : vector<2x64xf32>
    %237 = tpu.matmul %202, %3, %cst_77 {dimension_numbers = #tpu.dot_dimension_numbers<[1], [0], [0], [1], [0, 0, 1, 1], [], []>} : vector<2x32xf32>, vector<32x64xf32>, vector<2x64xf32> -> vector<2x64xf32>
    %238 = arith.addf %236, %237 : vector<2x64xf32>
    %cst_78 = arith.constant dense<0.000000e+00> : vector<2x64xf32>
    %239 = tpu.matmul %204, %5, %cst_78 {dimension_numbers = #tpu.dot_dimension_numbers<[1], [0], [0], [1], [0, 0, 1, 1], [], []>} : vector<2x32xf32>, vector<32x64xf32>, vector<2x64xf32> -> vector<2x64xf32>
    %240 = arith.addf %238, %239 : vector<2x64xf32>
    %cst_79 = arith.constant dense<0.000000e+00> : vector<2x64xf32>
    %241 = tpu.matmul %206, %7, %cst_79 {dimension_numbers = #tpu.dot_dimension_numbers<[1], [0], [0], [1], [0, 0, 1, 1], [], []>} : vector<2x32xf32>, vector<32x64xf32>, vector<2x64xf32> -> vector<2x64xf32>
    %242 = arith.addf %240, %241 : vector<2x64xf32>
    %243 = vector.broadcast %213 : vector<2x1xf32> to vector<2x64xf32>
    %244 = vector.broadcast %8 : vector<1x64xf32> to vector<2x64xf32>
    %245 = arith.mulf %243, %244 : vector<2x64xf32>
    %246 = arith.subf %242, %245 : vector<2x64xf32>
    %247 = vector.broadcast %235 : vector<2x1xf32> to vector<2x64xf32>
    %248 = arith.mulf %247, %246 : vector<2x64xf32>
    %249 = vector.broadcast %9 : vector<1x64xf32> to vector<2x64xf32>
    %250 = arith.addf %248, %249 : vector<2x64xf32>
    %c1_80 = arith.constant 1 : index
    %c2_81 = arith.constant 2 : index
    %c0_82 = arith.constant 0 : index
    %251 = vector.load %arg6[%c1_80, %c2_81, %c0_82] : memref<2x4x64xf32, #tpu.memory_space<vmem>>, vector<1x2x64xf32>
    %252 = vector.shape_cast %251 : vector<1x2x64xf32> to vector<2x64xf32>
    %253 = vector.shape_cast %250 : vector<2x64xf32> to vector<1x2x64xf32>
    tpu.vector_store %arg6[%c1_80, %c2_81, %c0_82], %253 {strides = array<i32>} : memref<2x4x64xf32, #tpu.memory_space<vmem>>, vector<1x2x64xf32>,
    return
  }
  func.func @transform_0(%arg0: i32, %arg1: i32) -> (i32, i32, i32, i32, i32, i32) {
    %c0_i32 = arith.constant 0 : i32
    %c0_i32_0 = arith.constant 0 : i32
    %c0_i32_1 = arith.constant 0 : i32
    %c0_i32_2 = arith.constant 0 : i32
    %c0_i32_3 = arith.constant 0 : i32
    return %arg0, %c0_i32, %arg1, %c0_i32_0, %c0_i32_1, %c0_i32_2 : i32, i32, i32, i32, i32, i32
  }
  func.func @transform_1(%arg0: i32, %arg1: i32) -> (i32, i32, i32) {
    %c0_i32 = arith.constant 0 : i32
    %c0_i32_0 = arith.constant 0 : i32
    %c0_i32_1 = arith.constant 0 : i32
    %c0_i32_2 = arith.constant 0 : i32
    return %c0_i32, %c0_i32_0, %c0_i32_1 : i32, i32, i32
  }
  func.func @transform_2(%arg0: i32, %arg1: i32) -> (i32, i32) {
    %c0_i32 = arith.constant 0 : i32
    %c0_i32_0 = arith.constant 0 : i32
    %c0_i32_1 = arith.constant 0 : i32
    return %c0_i32, %c0_i32_0 : i32, i32
  }
  func.func @transform_3(%arg0: i32, %arg1: i32) -> (i32, i32) {
    %c0_i32 = arith.constant 0 : i32
    %c0_i32_0 = arith.constant 0 : i32
    %c0_i32_1 = arith.constant 0 : i32
    return %c0_i32, %c0_i32_0 : i32, i32
  }
  func.func @transform_4(%arg0: i32, %arg1: i32) -> (i32, i32, i32) {
    %c0_i32 = arith.constant 0 : i32
    %c0_i32_0 = arith.constant 0 : i32
    return %arg0, %arg1, %c0_i32 : i32, i32, i32
  }
}

</mosaic_0001>

<llo_original>
// kernel: tpu_custom_call.1
$region0: #{tpu_custom_call.1}
  #allocation0 [shape = 'u32[]', space=smem, size = 0x4, offset = 0x4, fixed_abs, tag = 'smem constant byte address 0x4 - core index']
  #allocation1 [shape = 'u32[72,128]{1,0:T(1,128)}', space=vmem, size = 0x9000, scoped, tag = 'internal scratch']
  %s0 = inlined_call_operand.hbm [shape: f32[4,2,2,2,2,32], index: 0, kind: input, shape index: {}]
  %s1 = inlined_call_operand.hbm [shape: f32[4,32,64], index: 1, kind: input, shape index: {}]
  %s2 = inlined_call_operand.vmem [shape: f32[1,64], index: 2, kind: input, shape index: {}]
  %s3 = inlined_call_operand.vmem [shape: f32[1,64], index: 3, kind: input, shape index: {}]
  %s4 = inlined_call_operand.hbm [shape: f32[4,4,64], index: 4, kind: output, shape index: {}]
  %s5 = sld [smem:[#allocation0]]
  $region57: #{tpu_custom_call.1} parent=0
    _
  %s7 = ssub.s32 1, %s5
  %s8 = scalar_select 0, %s7, %s5
  $region1: #{tpu_custom_call.1} parent=0
    #allocation2 [shape = 'u8[32768]{0}', space=vmem, size = 0x8000, scoped, tag = 'input window, operand 0']
    #allocation3 [shape = 's32[2]{0}', space=sflag, size = 0x8, scoped, tag = 'scoped memory for tpu_custom_call.1']
    #allocation4 [shape = 's32[2]{0}', space=sflag, size = 0x8, scoped, tag = 'scoped memory for tpu_custom_call.1']
    #allocation5 [shape = 'u8[65536]{0}', space=vmem, size = 0x10000, scoped, tag = 'input window, operand 1, single buffered']
    #allocation6 [shape = 's32[1]{0}', space=sflag, size = 0x4, scoped, tag = 'scoped memory for tpu_custom_call.1']
    #allocation7 [shape = 'u8[8192]{0}', space=vmem, size = 0x2000, scoped, tag = 'output window, operand 0']
    %9 = vsyncpa [#allocation3], 0
    %s10 = scalar_lea.sflag [#allocation3], 1
    %11 = vsyncpa %s10, 0
    %12 = vsyncpa [#allocation6], 0
    %13 = vsyncpa [#allocation4], 0
    %s14 = scalar_lea.sflag [#allocation4], 1
    %15 = vsyncpa %s14, 0
    loop: start=0, step=1, limit=4
    $region2: #{tpu_custom_call.1} parent=1 // loop_pre_header
      _
    $region3: #{tpu_custom_call.1} parent=1 // loop_header
      %s17 = sphi 0, %s21
      %p18 = scmp.ge.s32.totalorder %s17, 4
      %s24 = sphi 0, %s36
      %s25 = sphi 0, %s32
      %s26 = sphi 0, %s24
      %s27 = sphi 0, %s25
      %s28 = sphi 0, %s26
      %s29 = sphi 0, %s27
      %s41 = sphi 0, %s43
      %s44 = sphi 0, %s41
      %s45 = sphi 0, %s44
      %s61 = sphi 0, %s45
      %s65 = sphi 0, %s65
      %s67 = sphi 0, %s65
      %s68 = sphi 0, %s67
      %s82 = sphi 0, %s68
      %s86 = sphi 0, %s86
      %s88 = sphi 0, %s86
      %s89 = sphi 0, %s88
      %s103 = sphi 0, %s89
      %s107 = sphi 0, %s107
      %s109 = sphi 0, %s107
      %s110 = sphi 0, %s109
      %s124 = sphi 0, %s110
      %s132 = sphi 0, %s134
      %s135 = sphi 0, %s132
      %s136 = sphi 0, %s135
      %s152 = sphi 0, %s136
    $region4: #{tpu_custom_call.1} parent=1 // loop_header_branch
      %20 = sbr.rel (%p18) target = $region8
    $region5: #{tpu_custom_call.1} parent=1 // loop_body
      %s22 = ssub.s32 %s17, 1
      %s23 = ssub.s32 %s17, 2
      %s30 = sadd.s32 1, %s25
      %p31 = scmp.ge.s32.totalorder %s30, 1
      %s32 = scalar_select %p31, 0, %s30
      %s33 = sadd.s32 1, %s24
      %s34 = scalar_select %p31, %s33, %s24
      %p35 = scmp.ge.s32.totalorder %s34, 2
      %s36 = scalar_select %p35, 0, %s34
      %s37 = ssub.s32 %s24, %s36
      %s38 = ssub.s32 %s25, %s32
      %s39 = sor.u32 %s37, %s38
      %p40 = scmp.eq.s32.totalorder %s39, 0
      %s42 = sadd.s32 %s41, 1
      %s43 = scalar_select %p40, %s41, %s42
      %p46 = pneg %p40
      %p47 = scmp.eq.s32.totalorder %s17, 1
      %p48 = por %p46, %p47
      %p49 = scmp.ne.s32.totalorder %s41, %s44
      %p50 = scmp.eq.s32.totalorder %s17, 0
      %p51 = por %p49, %p50
      %p52 = scmp.ne.s32.totalorder %s41, %s44
      %p53 = scmp.eq.s32.totalorder %s22, 1
      %p54 = por %p52, %p53
      %p55 = scmp.ne.s32.totalorder %s44, %s45
      %p56 = scmp.eq.s32.totalorder %s22, 0
      %p57 = por %p55, %p56
      %p58 = scmp.ne.s32.totalorder %s44, %s45
      %p59 = scmp.eq.s32.totalorder %s23, 1
      %p60 = por %p58, %p59
      %p62 = scmp.ne.s32.totalorder %s45, %s61
      %p63 = scmp.eq.s32.totalorder %s23, 0
      %p64 = por %p62, %p63
      %s66 = sadd.s32 %s65, 1
      %p69 = scmp.eq.s32.totalorder %s17, 1
      %p70 = scmp.ne.s32.totalorder %s65, %s67
      %p71 = scmp.eq.s32.totalorder %s17, 0
      %p72 = por %p70, %p71
      %p73 = scmp.ne.s32.totalorder %s65, %s67
      %p74 = scmp.eq.s32.totalorder %s22, 1
      %p75 = por %p73, %p74
      %p76 = scmp.ne.s32.totalorder %s67, %s68
      %p77 = scmp.eq.s32.totalorder %s22, 0
      %p78 = por %p76, %p77
      %p79 = scmp.ne.s32.totalorder %s67, %s68
      %p80 = scmp.eq.s32.totalorder %s23, 1
      %p81 = por %p79, %p80
      %p83 = scmp.ne.s32.totalorder %s68, %s82
      %p84 = scmp.eq.s32.totalorder %s23, 0
      %p85 = por %p83, %p84
      %s87 = sadd.s32 %s86, 1
      %p90 = scmp.eq.s32.totalorder %s17, 1
      %p91 = scmp.ne.s32.totalorder %s86, %s88
      %p92 = scmp.eq.s32.totalorder %s17, 0
      %p93 = por %p91, %p92
      %p94 = scmp.ne.s32.totalorder %s86, %s88
      %p95 = scmp.eq.s32.totalorder %s22, 1
      %p96 = por %p94, %p95
      %p97 = scmp.ne.s32.totalorder %s88, %s89
      %p98 = scmp.eq.s32.totalorder %s22, 0
      %p99 = por %p97, %p98
      %p100 = scmp.ne.s32.totalorder %s88, %s89
      %p101 = scmp.eq.s32.totalorder %s23, 1
      %p102 = por %p100, %p101
      %p104 = scmp.ne.s32.totalorder %s89, %s103
      %p105 = scmp.eq.s32.totalorder %s23, 0
      %p106 = por %p104, %p105
      %s108 = sadd.s32 %s107, 1
      %p111 = scmp.eq.s32.totalorder %s17, 1
      %p112 = scmp.ne.s32.totalorder %s107, %s109
      %p113 = scmp.eq.s32.totalorder %s17, 0
      %p114 = por %p112, %p113
      %p115 = scmp.ne.s32.totalorder %s107, %s109
      %p116 = scmp.eq.s32.totalorder %s22, 1
      %p117 = por %p115, %p116
      %p118 = scmp.ne.s32.totalorder %s109, %s110
      %p119 = scmp.eq.s32.totalorder %s22, 0
      %p120 = por %p118, %p119
      %p121 = scmp.ne.s32.totalorder %s109, %s110
      %p122 = scmp.eq.s32.totalorder %s23, 1
      %p123 = por %p121, %p122
      %p125 = scmp.ne.s32.totalorder %s110, %s124
      %p126 = scmp.eq.s32.totalorder %s23, 0
      %p127 = por %p125, %p126
      %s128 = ssub.s32 %s24, %s36
      %s129 = ssub.s32 %s25, %s32
      %s130 = sor.u32 %s128, %s129
      %p131 = scmp.eq.s32.totalorder %s130, 0
      %s133 = sadd.s32 %s132, 1
      %s134 = scalar_select %p131, %s132, %s133
      %p137 = pneg %p131
      %p138 = scmp.eq.s32.totalorder %s17, 1
      %p139 = por %p137, %p138
      %p140 = scmp.ne.s32.totalorder %s132, %s135
      %p141 = scmp.eq.s32.totalorder %s17, 0
      %p142 = por %p140, %p141
      %p143 = scmp.ne.s32.totalorder %s132, %s135
      %p144 = scmp.eq.s32.totalorder %s22, 1
      %p145 = por %p143, %p144
      %p146 = scmp.ne.s32.totalorder %s135, %s136
      %p147 = scmp.eq.s32.totalorder %s22, 0
      %p148 = por %p146, %p147
      %p149 = scmp.ne.s32.totalorder %s135, %s136
      %p150 = scmp.eq.s32.totalorder %s23, 1
      %p151 = por %p149, %p150
      %p153 = scmp.ne.s32.totalorder %s136, %s152
      %p154 = scmp.eq.s32.totalorder %s23, 0
      %p155 = por %p153, %p154
      %p156 = scmp.le.s32.totalorder 1, %s17
      %p157 = scmp.lt.s32.totalorder %s17, 3
      %p158 = pnand %p156, %p157
      %p159 = pneg %p158
      // Predicated region
      $region9: #{tpu_custom_call.1} parent=5 // pred_check
        _
      $region10: #{tpu_custom_call.1} parent=5 // pred_check_branch
        %161 = sbr.rel (%p158) target = $region12
      $region11: #{tpu_custom_call.1} parent=5 // pred_region
        %s162 = ssub.s32 %s17, 1
        // Predicated region
        $region13: #{tpu_custom_call.1} parent=11 // pred_check
          %p163 = pneg %p78
        $region14: #{tpu_custom_call.1} parent=11 // pred_check_branch
          %165 = sbr.rel (%p163) target = $region16
        $region15: #{tpu_custom_call.1} parent=11 // pred_region
          %167 = vsyncadd [#allocation6], 0
          %s168 = sshll.u32 %s1, 4
          %s169 = int_to_ptr.hbm [resolvable:$true] %s168
          %s170 = sshll.u32 [#allocation5], 4
          %s171 = int_to_ptr.vmem [resolvable:$true] %s170
          %176 = dma.hbm_to_vmem [thread:$0]  %s169, 2048, %s171, [#allocation6], 128, 128, 8
        $region16: #{tpu_custom_call.1} parent=11 // pred_fallthru
          _
        // Predicated region
        $region17: #{tpu_custom_call.1} parent=11 // pred_check
          %p177 = pneg %p99
        $region18: #{tpu_custom_call.1} parent=11 // pred_check_branch
          %179 = sbr.rel (%p177) target = $region20
        $region19: #{tpu_custom_call.1} parent=11 // pred_region
          _
        $region20: #{tpu_custom_call.1} parent=11 // pred_fallthru
          _
        // Predicated region
        $region21: #{tpu_custom_call.1} parent=11 // pred_check
          %p180 = pneg %p120
        $region22: #{tpu_custom_call.1} parent=11 // pred_check_branch
          %182 = sbr.rel (%p180) target = $region24
        $region23: #{tpu_custom_call.1} parent=11 // pred_region
          _
        $region24: #{tpu_custom_call.1} parent=11 // pred_fallthru
          _
      $region12: #{tpu_custom_call.1} parent=5 // pred_fallthru
        _
      %p183 = scmp.lt.s32.totalorder %s17, 2
      // Predicated region
      $region25: #{tpu_custom_call.1} parent=5 // pred_check
        %p184 = pneg %p183
      $region26: #{tpu_custom_call.1} parent=5 // pred_check_branch
        %186 = sbr.rel (%p184) target = $region28
      $region27: #{tpu_custom_call.1} parent=5 // pred_region
        // Predicated region
        $region29: #{tpu_custom_call.1} parent=27 // pred_check
          %p187 = pneg %p51
        $region30: #{tpu_custom_call.1} parent=27 // pred_check_branch
          %189 = sbr.rel (%p187) target = $region32
        $region31: #{tpu_custom_call.1} parent=27 // pred_region
          %s190 = sand.u32 %s41, 1
          %s191 = scalar_lea.sflag [#allocation3], %s190
          %s192 = sand.u32 %s41, 1
          %s193 = smul.addr %s192, 32
          %s194 = scalar_lea.vmem [#allocation2], %s193
          %s195 = smul.u32 2, %s24
          %s196 = smul.u32 2, %s25
          %198 = vsyncadd %s191, 0
          %s199 = smul.addr %s196, 2
          %s200 = smul.addr %s195, 8
          %s201 = sadd.s32 %s199, %s200
          %s202 = smul.addr %s201, 2
          %s203 = scalar_lea.hbm %s0, %s202
          %s204 = sshll.u32 %s203, 4
          %s205 = int_to_ptr.hbm [resolvable:$true] %s204
          %s206 = sshll.u32 %s194, 4
          %s207 = int_to_ptr.vmem [resolvable:$true] %s206
          %212 = dma.hbm_to_vmem [thread:$0]  %s205, 512, %s207, %s191, 32, 32, 2
        $region32: #{tpu_custom_call.1} parent=27 // pred_fallthru
          _
      $region28: #{tpu_custom_call.1} parent=5 // pred_fallthru
        _
      %p213 = scmp.le.s32.totalorder 1, %s17
      %p214 = scmp.lt.s32.totalorder %s17, 3
      %p215 = pnand %p213, %p214
      %p216 = pneg %p215
      // Predicated region
      $region33: #{tpu_custom_call.1} parent=5 // pred_check
        _
      $region34: #{tpu_custom_call.1} parent=5 // pred_check_branch
        %218 = sbr.rel (%p215) target = $region36
      $region35: #{tpu_custom_call.1} parent=5 // pred_region
        %s219 = ssub.s32 %s17, 1
        %s220 = sand.u32 %s44, 1
        %s221 = scalar_lea.sflag [#allocation3], %s220
        %s222 = sand.u32 %s44, 1
        %s223 = smul.addr %s222, 32
        %s224 = scalar_lea.vmem [#allocation2], %s223
        // Predicated region
        $region37: #{tpu_custom_call.1} parent=35 // pred_check
          %p225 = pneg %p57
        $region38: #{tpu_custom_call.1} parent=35 // pred_check_branch
          %227 = sbr.rel (%p225) target = $region40
        $region39: #{tpu_custom_call.1} parent=35 // pred_region
          %229 = dma.done %s221, 512
        $region40: #{tpu_custom_call.1} parent=35 // pred_fallthru
          _
        // Predicated region
        $region41: #{tpu_custom_call.1} parent=35 // pred_check
          %p230 = pneg %p78
        $region42: #{tpu_custom_call.1} parent=35 // pred_check_branch
          %232 = sbr.rel (%p230) target = $region44
        $region43: #{tpu_custom_call.1} parent=35 // pred_region
          %234 = dma.done [#allocation6], 2048
        $region44: #{tpu_custom_call.1} parent=35 // pred_fallthru
          _
        %s235 = sand.u32 %s44, 1
        %s236 = scalar_lea.sflag [#allocation3], %s235
        %s237 = sand.u32 %s44, 1
        %s238 = smul.addr %s237, 32
        %s239 = scalar_lea.vmem [#allocation2], %s238
        %p240 = pneg %p57
        %p241 = pneg %p54
        %p242 = pneg %p78
        %p243 = pneg %p75
        %p244 = pneg %p99
        %p245 = pneg %p96
        %p246 = pneg %p120
        %p247 = pneg %p117
        %p248 = pneg %p148
        %p249 = pneg %p145
        %s250 = sand.u32 %s135, 1
        %s251 = scalar_lea.sflag [#allocation4], %s250
        %s252 = sand.u32 %s135, 1
        %s253 = smul.addr %s252, 8
        %s254 = scalar_lea.vmem [#allocation7], %s253
        %s255 = smul.u32 2, %s26
        %s256 = smul.u32 2, %s27
        %s257 = smul.u32 2, %s26
        %v258 = vld [vmem:[#allocation5] sm:$0xff]
        %v259 = vld [vmem:[#allocation5 + $0x8] sm:$0xff]
        %v260 = vld [vmem:[#allocation5 + $0x10] sm:$0xff]
        %v261 = vld [vmem:[#allocation5 + $0x18] sm:$0xff]
        %s262 = scalar_lea.vmem [#allocation5], 32
        %v263 = vld [vmem:[%s262] sm:$0xff]
        %v264 = vld [vmem:[%s262 + $0x8] sm:$0xff]
        %v265 = vld [vmem:[%s262 + $0x10] sm:$0xff]
        %v266 = vld [vmem:[%s262 + $0x18] sm:$0xff]
        %s267 = scalar_lea.vmem [#allocation5], 64
        %v268 = vld [vmem:[%s267] sm:$0xff]
        %v269 = vld [vmem:[%s267 + $0x8] sm:$0xff]
        %v270 = vld [vmem:[%s267 + $0x10] sm:$0xff]
        %v271 = vld [vmem:[%s267 + $0x18] sm:$0xff]
        %s272 = scalar_lea.vmem [#allocation5], 96
        %v273 = vld [vmem:[%s272] sm:$0xff]
        %v274 = vld [vmem:[%s272 + $0x8] sm:$0xff]
        %v275 = vld [vmem:[%s272 + $0x10] sm:$0xff]
        %v276 = vld [vmem:[%s272 + $0x18] sm:$0xff]
        %v277 = vld [vmem:[%s2] sm:$0x1]
        %v278 = vld [vmem:[%s3] sm:$0x1]
        %v279 = vld [vmem:[%s224] sm:$0x3]
        %v280 = vld [vmem:[%s224 + $0x2] sm:$0x3]
        %v281 = vld [vmem:[%s224 + $0x4] sm:$0x3]
        %v282 = vld [vmem:[%s224 + $0x6] sm:$0x3]
        %s283 = scalar_lea.vmem %s224, 8 [#allocation2]
        %v284 = vld [vmem:[%s283] sm:$0x3]
        %v285 = vld [vmem:[%s283 + $0x2] sm:$0x3]
        %v286 = vld [vmem:[%s283 + $0x4] sm:$0x3]
        %v287 = vld [vmem:[%s283 + $0x6] sm:$0x3]
        %v288 = vadd.f32 %v279, %v280
        %v289 = vadd.f32 %v288, %v284
        %v290 = vadd.f32 %v289, %v285
        %vm291 = vcmask 254976
        %v292 = vsel %vm291, %v290, 0.0
        %293 = vadd.xlane.f32.xlu0 %v292
        %v294 = vpop.xlane.xlu0 %293
        %v295 = vmul.f32 %v294, 0.0078125
        %v296 = vsub.f32 %v279, %v295
        %v297 = vmul.f32 %v296, %v296
        %v298 = vsub.f32 %v280, %v295
        %v299 = vmul.f32 %v298, %v298
        %v300 = vadd.f32 %v297, %v299
        %v301 = vsub.f32 %v284, %v295
        %v302 = vmul.f32 %v301, %v301
        %v303 = vadd.f32 %v300, %v302
        %v304 = vsub.f32 %v285, %v295
        %v305 = vmul.f32 %v304, %v304
        %v306 = vadd.f32 %v303, %v305
        %v307 = vsel %vm291, %v306, 0.0
        %308 = vadd.xlane.f32.xlu0 %v307
        %v309 = vpop.xlane.xlu0 %308
        %v310 = vmul.f32 %v309, 0.0078125
        %v311 = vadd.f32 %v310, 1e-05
        %v312 = vrsqrt.pop %v311
        %v313 = vmul.f32 %v312, %v311
        %v314 = vmul.f32 %v313, %v312
        %v315 = vmul.f32 0.5, %v314
        %v316 = vsub.f32 1.5, %v315
        %v317 = vmul.f32 %v312, %v316
        %vm318 = vweird.f32 %v311
        %vm319 = vweird.f32 %v312
        %vm320 = vmor %vm318, %vm319
        %v321 = vsel %vm320, %v312, %v317
        %vm322 = vcmask 261120
        %v324 = vsel %vm322, %v280, 0
        %326 = vmatpush.msra.mxu0 0.0
        %327 = vmatpush.msra.mxu0 0.0
        %328 = vmatpush.msra.mxu0 0.0
        %329 = vmatpush.msra.mxu0 0.0
        %330 = vmatpush.msra.mxu0 0.0
        %331 = vmatpush.msra.mxu0 0.0
        %332 = vmatpush.msra.mxu0 0.0
        %333 = vmatpush.msra.mxu0 0.0
        %334 = vmatpush.msra.mxu0 0.0
        %335 = vmatpush.msra.mxu0 0.0
        %336 = vmatpush.msra.mxu0 0.0
        %337 = vmatpush.msra.mxu0 0.0
        %338 = vmatpush.msra.mxu0 %v266
        %339 = vmatpush.msra.mxu0 %v265
        %340 = vmatpush.msra.mxu0 %v264
        %341 = vmatpush.msra.mxu0 %v263
        %342 = vmatmul.f32.gmra.mxu0 %v324
        %v343 = vpop.f32.mrf.mxu0
        %v344 = vadd.f32 0.0, %v343
        %345 = vdwg.mxu0
        %v347 = vsel %vm322, %v279, 0
        %349 = vmatpush.msra.mxu0 0.0
        %350 = vmatpush.msra.mxu0 0.0
        %351 = vmatpush.msra.mxu0 0.0
        %352 = vmatpush.msra.mxu0 0.0
        %353 = vmatpush.msra.mxu0 0.0
        %354 = vmatpush.msra.mxu0 0.0
        %355 = vmatpush.msra.mxu0 0.0
        %356 = vmatpush.msra.mxu0 0.0
        %357 = vmatpush.msra.mxu0 0.0
        %358 = vmatpush.msra.mxu0 0.0
        %359 = vmatpush.msra.mxu0 0.0
        %360 = vmatpush.msra.mxu0 0.0
        %361 = vmatpush.msra.mxu0 %v261
        %362 = vmatpush.msra.mxu0 %v260
        %363 = vmatpush.msra.mxu0 %v259
        %364 = vmatpush.msra.mxu0 %v258
        %365 = vmatmul.f32.gmra.mxu0 %v347
        %v366 = vpop.f32.mrf.mxu0
        %v367 = vadd.f32 %v344, %v366
        %368 = vdwg.mxu0
        %v370 = vsel %vm322, %v284, 0
        %372 = vmatpush.msra.mxu0 0.0
        %373 = vmatpush.msra.mxu0 0.0
        %374 = vmatpush.msra.mxu0 0.0
        %375 = vmatpush.msra.mxu0 0.0
        %376 = vmatpush.msra.mxu0 0.0
        %377 = vmatpush.msra.mxu0 0.0
        %378 = vmatpush.msra.mxu0 0.0
        %379 = vmatpush.msra.mxu0 0.0
        %380 = vmatpush.msra.mxu0 0.0
        %381 = vmatpush.msra.mxu0 0.0
        %382 = vmatpush.msra.mxu0 0.0
        %383 = vmatpush.msra.mxu0 0.0
        %384 = vmatpush.msra.mxu0 %v271
        %385 = vmatpush.msra.mxu0 %v270
        %386 = vmatpush.msra.mxu0 %v269
        %387 = vmatpush.msra.mxu0 %v268
        %388 = vmatmul.f32.gmra.mxu0 %v370
        %v389 = vpop.f32.mrf.mxu0
        %v390 = vadd.f32 0.0, %v389
        %391 = vdwg.mxu0
        %v392 = vadd.f32 %v367, %v390
        %v394 = vsel %vm322, %v285, 0
        %396 = vmatpush.msra.mxu0 0.0
        %397 = vmatpush.msra.mxu0 0.0
        %398 = vmatpush.msra.mxu0 0.0
        %399 = vmatpush.msra.mxu0 0.0
        %400 = vmatpush.msra.mxu0 0.0
        %401 = vmatpush.msra.mxu0 0.0
        %402 = vmatpush.msra.mxu0 0.0
        %403 = vmatpush.msra.mxu0 0.0
        %404 = vmatpush.msra.mxu0 0.0
        %405 = vmatpush.msra.mxu0 0.0
        %406 = vmatpush.msra.mxu0 0.0
        %407 = vmatpush.msra.mxu0 0.0
        %408 = vmatpush.msra.mxu0 %v276
        %409 = vmatpush.msra.mxu0 %v275
        %410 = vmatpush.msra.mxu0 %v274
        %411 = vmatpush.msra.mxu0 %v273
        %412 = vmatmul.f32.gmra.mxu0 %v394
        %v413 = vpop.f32.mrf.mxu0
        %v414 = vadd.f32 0.0, %v413
        %415 = vdwg.mxu0
        %v416 = vadd.f32 %v392, %v414
        %v418 = vperm.slane %v277, 0
        %v420 = vmul.f32 %v295, %v418
        %v421 = vsub.f32 %v416, %v420
        %v422 = vmul.f32 %v321, %v421
        %v424 = vperm.slane %v278, 0
        %v426 = vadd.f32 %v422, %v424
        %vm427 = vcmask 517120
        %428 = vst.msk [vmem:[%s254] sm:$0x3] %vm427, %v426
        %v429 = vadd.f32 %v281, %v282
        %v430 = vadd.f32 %v429, %v286
        %v431 = vadd.f32 %v430, %v287
        %v432 = vsel %vm291, %v431, 0.0
        %433 = vadd.xlane.f32.xlu0 %v432
        %v434 = vpop.xlane.xlu0 %433
        %v435 = vmul.f32 %v434, 0.0078125
        %v436 = vsub.f32 %v281, %v435
        %v437 = vmul.f32 %v436, %v436
        %v438 = vsub.f32 %v282, %v435
        %v439 = vmul.f32 %v438, %v438
        %v440 = vadd.f32 %v437, %v439
        %v441 = vsub.f32 %v286, %v435
        %v442 = vmul.f32 %v441, %v441
        %v443 = vadd.f32 %v440, %v442
        %v444 = vsub.f32 %v287, %v435
        %v445 = vmul.f32 %v444, %v444
        %v446 = vadd.f32 %v443, %v445
        %v447 = vsel %vm291, %v446, 0.0
        %448 = vadd.xlane.f32.xlu0 %v447
        %v449 = vpop.xlane.xlu0 %448
        %v450 = vmul.f32 %v449, 0.0078125
        %v451 = vadd.f32 %v450, 1e-05
        %v452 = vrsqrt.pop %v451
        %v453 = vmul.f32 %v452, %v451
        %v454 = vmul.f32 %v453, %v452
        %v455 = vmul.f32 0.5, %v454
        %v456 = vsub.f32 1.5, %v455
        %v457 = vmul.f32 %v452, %v456
        %vm458 = vweird.f32 %v451
        %vm459 = vweird.f32 %v452
        %vm460 = vmor %vm458, %vm459
        %v461 = vsel %vm460, %v452, %v457
        %v463 = vsel %vm322, %v282, 0
        %465 = vmatpush.msra.mxu0 0.0
        %466 = vmatpush.msra.mxu0 0.0
        %467 = vmatpush.msra.mxu0 0.0
        %468 = vmatpush.msra.mxu0 0.0
        %469 = vmatpush.msra.mxu0 0.0
        %470 = vmatpush.msra.mxu0 0.0
        %471 = vmatpush.msra.mxu0 0.0
        %472 = vmatpush.msra.mxu0 0.0
        %473 = vmatpush.msra.mxu0 0.0
        %474 = vmatpush.msra.mxu0 0.0
        %475 = vmatpush.msra.mxu0 0.0
        %476 = vmatpush.msra.mxu0 0.0
        %477 = vmatpush.msra.mxu0 %v266
        %478 = vmatpush.msra.mxu0 %v265
        %479 = vmatpush.msra.mxu0 %v264
        %480 = vmatpush.msra.mxu0 %v263
        %481 = vmatmul.f32.gmra.mxu0 %v463
        %v482 = vpop.f32.mrf.mxu0
        %v483 = vadd.f32 0.0, %v482
        %484 = vdwg.mxu0
        %v486 = vsel %vm322, %v281, 0
        %488 = vmatpush.msra.mxu0 0.0
        %489 = vmatpush.msra.mxu0 0.0
        %490 = vmatpush.msra.mxu0 0.0
        %491 = vmatpush.msra.mxu0 0.0
        %492 = vmatpush.msra.mxu0 0.0
        %493 = vmatpush.msra.mxu0 0.0
        %494 = vmatpush.msra.mxu0 0.0
        %495 = vmatpush.msra.mxu0 0.0
        %496 = vmatpush.msra.mxu0 0.0
        %497 = vmatpush.msra.mxu0 0.0
        %498 = vmatpush.msra.mxu0 0.0
        %499 = vmatpush.msra.mxu0 0.0
        %500 = vmatpush.msra.mxu0 %v261
        %501 = vmatpush.msra.mxu0 %v260
        %502 = vmatpush.msra.mxu0 %v259
        %503 = vmatpush.msra.mxu0 %v258
        %504 = vmatmul.f32.gmra.mxu0 %v486
        %v505 = vpop.f32.mrf.mxu0
        %v506 = vadd.f32 %v483, %v505
        %507 = vdwg.mxu0
        %v509 = vsel %vm322, %v286, 0
        %511 = vmatpush.msra.mxu0 0.0
        %512 = vmatpush.msra.mxu0 0.0
        %513 = vmatpush.msra.mxu0 0.0
        %514 = vmatpush.msra.mxu0 0.0
        %515 = vmatpush.msra.mxu0 0.0
        %516 = vmatpush.msra.mxu0 0.0
        %517 = vmatpush.msra.mxu0 0.0
        %518 = vmatpush.msra.mxu0 0.0
        %519 = vmatpush.msra.mxu0 0.0
        %520 = vmatpush.msra.mxu0 0.0
        %521 = vmatpush.msra.mxu0 0.0
        %522 = vmatpush.msra.mxu0 0.0
        %523 = vmatpush.msra.mxu0 %v271
        %524 = vmatpush.msra.mxu0 %v270
        %525 = vmatpush.msra.mxu0 %v269
        %526 = vmatpush.msra.mxu0 %v268
        %527 = vmatmul.f32.gmra.mxu0 %v509
        %v528 = vpop.f32.mrf.mxu0
        %v529 = vadd.f32 0.0, %v528
        %530 = vdwg.mxu0
        %v531 = vadd.f32 %v506, %v529
        %v533 = vsel %vm322, %v287, 0
        %535 = vmatpush.msra.mxu0 0.0
        %536 = vmatpush.msra.mxu0 0.0
        %537 = vmatpush.msra.mxu0 0.0
        %538 = vmatpush.msra.mxu0 0.0
        %539 = vmatpush.msra.mxu0 0.0
        %540 = vmatpush.msra.mxu0 0.0
        %541 = vmatpush.msra.mxu0 0.0
        %542 = vmatpush.msra.mxu0 0.0
        %543 = vmatpush.msra.mxu0 0.0
        %544 = vmatpush.msra.mxu0 0.0
        %545 = vmatpush.msra.mxu0 0.0
        %546 = vmatpush.msra.mxu0 0.0
        %547 = vmatpush.msra.mxu0 %v276
        %548 = vmatpush.msra.mxu0 %v275
        %549 = vmatpush.msra.mxu0 %v274
        %550 = vmatpush.msra.mxu0 %v273
        %551 = vmatmul.f32.gmra.mxu0 %v533
        %v552 = vpop.f32.mrf.mxu0
        %v553 = vadd.f32 0.0, %v552
        %554 = vdwg.mxu0
        %v555 = vadd.f32 %v531, %v553
        %v556 = vmul.f32 %v435, %v418
        %v557 = vsub.f32 %v555, %v556
        %v558 = vmul.f32 %v461, %v557
        %v559 = vadd.f32 %v558, %v424
        %560 = vst.msk [vmem:[%s254 + $0x2] sm:$0x3] %vm427, %v559
        %s561 = scalar_lea.vmem %s224, 16 [#allocation2]
        %v562 = vld [vmem:[%s561] sm:$0x3]
        %v563 = vld [vmem:[%s561 + $0x2] sm:$0x3]
        %v564 = vld [vmem:[%s561 + $0x4] sm:$0x3]
        %v565 = vld [vmem:[%s561 + $0x6] sm:$0x3]
        %s566 = scalar_lea.vmem %s224, 24 [#allocation2]
        %v567 = vld [vmem:[%s566] sm:$0x3]
        %v568 = vld [vmem:[%s566 + $0x2] sm:$0x3]
        %v569 = vld [vmem:[%s566 + $0x4] sm:$0x3]
        %v570 = vld [vmem:[%s566 + $0x6] sm:$0x3]
        %v571 = vadd.f32 %v562, %v563
        %v572 = vadd.f32 %v571, %v567
        %v573 = vadd.f32 %v572, %v568
        %v574 = vsel %vm291, %v573, 0.0
        %575 = vadd.xlane.f32.xlu0 %v574
        %v576 = vpop.xlane.xlu0 %575
        %v577 = vmul.f32 %v576, 0.0078125
        %v578 = vsub.f32 %v562, %v577
        %v579 = vmul.f32 %v578, %v578
        %v580 = vsub.f32 %v563, %v577
        %v581 = vmul.f32 %v580, %v580
        %v582 = vadd.f32 %v579, %v581
        %v583 = vsub.f32 %v567, %v577
        %v584 = vmul.f32 %v583, %v583
        %v585 = vadd.f32 %v582, %v584
        %v586 = vsub.f32 %v568, %v577
        %v587 = vmul.f32 %v586, %v586
        %v588 = vadd.f32 %v585, %v587
        %v589 = vsel %vm291, %v588, 0.0
        %590 = vadd.xlane.f32.xlu0 %v589
        %v591 = vpop.xlane.xlu0 %590
        %v592 = vmul.f32 %v591, 0.0078125
        %v593 = vadd.f32 %v592, 1e-05
        %v594 = vrsqrt.pop %v593
        %v595 = vmul.f32 %v594, %v593
        %v596 = vmul.f32 %v595, %v594
        %v597 = vmul.f32 0.5, %v596
        %v598 = vsub.f32 1.5, %v597
        %v599 = vmul.f32 %v594, %v598
        %vm600 = vweird.f32 %v593
        %vm601 = vweird.f32 %v594
        %vm602 = vmor %vm600, %vm601
        %v603 = vsel %vm602, %v594, %v599
        %v605 = vsel %vm322, %v563, 0
        %607 = vmatpush.msra.mxu0 0.0
        %608 = vmatpush.msra.mxu0 0.0
        %609 = vmatpush.msra.mxu0 0.0
        %610 = vmatpush.msra.mxu0 0.0
        %611 = vmatpush.msra.mxu0 0.0
        %612 = vmatpush.msra.mxu0 0.0
        %613 = vmatpush.msra.mxu0 0.0
        %614 = vmatpush.msra.mxu0 0.0
        %615 = vmatpush.msra.mxu0 0.0
        %616 = vmatpush.msra.mxu0 0.0
        %617 = vmatpush.msra.mxu0 0.0
        %618 = vmatpush.msra.mxu0 0.0
        %619 = vmatpush.msra.mxu0 %v266
        %620 = vmatpush.msra.mxu0 %v265
        %621 = vmatpush.msra.mxu0 %v264
        %622 = vmatpush.msra.mxu0 %v263
        %623 = vmatmul.f32.gmra.mxu0 %v605
        %v624 = vpop.f32.mrf.mxu0
        %v625 = vadd.f32 0.0, %v624
        %626 = vdwg.mxu0
        %v628 = vsel %vm322, %v562, 0
        %630 = vmatpush.msra.mxu0 0.0
        %631 = vmatpush.msra.mxu0 0.0
        %632 = vmatpush.msra.mxu0 0.0
        %633 = vmatpush.msra.mxu0 0.0
        %634 = vmatpush.msra.mxu0 0.0
        %635 = vmatpush.msra.mxu0 0.0
        %636 = vmatpush.msra.mxu0 0.0
        %637 = vmatpush.msra.mxu0 0.0
        %638 = vmatpush.msra.mxu0 0.0
        %639 = vmatpush.msra.mxu0 0.0
        %640 = vmatpush.msra.mxu0 0.0
        %641 = vmatpush.msra.mxu0 0.0
        %642 = vmatpush.msra.mxu0 %v261
        %643 = vmatpush.msra.mxu0 %v260
        %644 = vmatpush.msra.mxu0 %v259
        %645 = vmatpush.msra.mxu0 %v258
        %646 = vmatmul.f32.gmra.mxu0 %v628
        %v647 = vpop.f32.mrf.mxu0
        %v648 = vadd.f32 %v625, %v647
        %649 = vdwg.mxu0
        %v651 = vsel %vm322, %v567, 0
        %653 = vmatpush.msra.mxu0 0.0
        %654 = vmatpush.msra.mxu0 0.0
        %655 = vmatpush.msra.mxu0 0.0
        %656 = vmatpush.msra.mxu0 0.0
        %657 = vmatpush.msra.mxu0 0.0
        %658 = vmatpush.msra.mxu0 0.0
        %659 = vmatpush.msra.mxu0 0.0
        %660 = vmatpush.msra.mxu0 0.0
        %661 = vmatpush.msra.mxu0 0.0
        %662 = vmatpush.msra.mxu0 0.0
        %663 = vmatpush.msra.mxu0 0.0
        %664 = vmatpush.msra.mxu0 0.0
        %665 = vmatpush.msra.mxu0 %v271
        %666 = vmatpush.msra.mxu0 %v270
        %667 = vmatpush.msra.mxu0 %v269
        %668 = vmatpush.msra.mxu0 %v268
        %669 = vmatmul.f32.gmra.mxu0 %v651
        %v670 = vpop.f32.mrf.mxu0
        %v671 = vadd.f32 0.0, %v670
        %672 = vdwg.mxu0
        %v673 = vadd.f32 %v648, %v671
        %v675 = vsel %vm322, %v568, 0
        %677 = vmatpush.msra.mxu0 0.0
        %678 = vmatpush.msra.mxu0 0.0
        %679 = vmatpush.msra.mxu0 0.0
        %680 = vmatpush.msra.mxu0 0.0
        %681 = vmatpush.msra.mxu0 0.0
        %682 = vmatpush.msra.mxu0 0.0
        %683 = vmatpush.msra.mxu0 0.0
        %684 = vmatpush.msra.mxu0 0.0
        %685 = vmatpush.msra.mxu0 0.0
        %686 = vmatpush.msra.mxu0 0.0
        %687 = vmatpush.msra.mxu0 0.0
        %688 = vmatpush.msra.mxu0 0.0
        %689 = vmatpush.msra.mxu0 %v276
        %690 = vmatpush.msra.mxu0 %v275
        %691 = vmatpush.msra.mxu0 %v274
        %692 = vmatpush.msra.mxu0 %v273
        %693 = vmatmul.f32.gmra.mxu0 %v675
        %v694 = vpop.f32.mrf.mxu0
        %v695 = vadd.f32 0.0, %v694
        %696 = vdwg.mxu0
        %v697 = vadd.f32 %v673, %v695
        %v698 = vmul.f32 %v577, %v418
        %v699 = vsub.f32 %v697, %v698
        %v700 = vmul.f32 %v603, %v699
        %v701 = vadd.f32 %v700, %v424
        %s702 = scalar_lea.vmem %s254, 4 [#allocation7]
        %703 = vst.msk [vmem:[%s702] sm:$0x3] %vm427, %v701
        %v704 = vadd.f32 %v564, %v565
        %v705 = vadd.f32 %v704, %v569
        %v706 = vadd.f32 %v705, %v570
        %v707 = vsel %vm291, %v706, 0.0
        %708 = vadd.xlane.f32.xlu0 %v707
        %v709 = vpop.xlane.xlu0 %708
        %v710 = vmul.f32 %v709, 0.0078125
        %v711 = vsub.f32 %v564, %v710
        %v712 = vmul.f32 %v711, %v711
        %v713 = vsub.f32 %v565, %v710
        %v714 = vmul.f32 %v713, %v713
        %v715 = vadd.f32 %v712, %v714
        %v716 = vsub.f32 %v569, %v710
        %v717 = vmul.f32 %v716, %v716
        %v718 = vadd.f32 %v715, %v717
        %v719 = vsub.f32 %v570, %v710
        %v720 = vmul.f32 %v719, %v719
        %v721 = vadd.f32 %v718, %v720
        %v722 = vsel %vm291, %v721, 0.0
        %723 = vadd.xlane.f32.xlu0 %v722
        %v724 = vpop.xlane.xlu0 %723
        %v725 = vmul.f32 %v724, 0.0078125
        %v726 = vadd.f32 %v725, 1e-05
        %v727 = vrsqrt.pop %v726
        %v728 = vmul.f32 %v727, %v726
        %v729 = vmul.f32 %v728, %v727
        %v730 = vmul.f32 0.5, %v729
        %v731 = vsub.f32 1.5, %v730
        %v732 = vmul.f32 %v727, %v731
        %vm733 = vweird.f32 %v726
        %vm734 = vweird.f32 %v727
        %vm735 = vmor %vm733, %vm734
        %v736 = vsel %vm735, %v727, %v732
        %v738 = vsel %vm322, %v565, 0
        %740 = vmatpush.msra.mxu0 0.0
        %741 = vmatpush.msra.mxu0 0.0
        %742 = vmatpush.msra.mxu0 0.0
        %743 = vmatpush.msra.mxu0 0.0
        %744 = vmatpush.msra.mxu0 0.0
        %745 = vmatpush.msra.mxu0 0.0
        %746 = vmatpush.msra.mxu0 0.0
        %747 = vmatpush.msra.mxu0 0.0
        %748 = vmatpush.msra.mxu0 0.0
        %749 = vmatpush.msra.mxu0 0.0
        %750 = vmatpush.msra.mxu0 0.0
        %751 = vmatpush.msra.mxu0 0.0
        %752 = vmatpush.msra.mxu0 %v266
        %753 = vmatpush.msra.mxu0 %v265
        %754 = vmatpush.msra.mxu0 %v264
        %755 = vmatpush.msra.mxu0 %v263
        %756 = vmatmul.f32.gmra.mxu0 %v738
        %v757 = vpop.f32.mrf.mxu0
        %v758 = vadd.f32 0.0, %v757
        %759 = vdwg.mxu0
        %v761 = vsel %vm322, %v564, 0
        %763 = vmatpush.msra.mxu0 0.0
        %764 = vmatpush.msra.mxu0 0.0
        %765 = vmatpush.msra.mxu0 0.0
        %766 = vmatpush.msra.mxu0 0.0
        %767 = vmatpush.msra.mxu0 0.0
        %768 = vmatpush.msra.mxu0 0.0
        %769 = vmatpush.msra.mxu0 0.0
        %770 = vmatpush.msra.mxu0 0.0
        %771 = vmatpush.msra.mxu0 0.0
        %772 = vmatpush.msra.mxu0 0.0
        %773 = vmatpush.msra.mxu0 0.0
        %774 = vmatpush.msra.mxu0 0.0
        %775 = vmatpush.msra.mxu0 %v261
        %776 = vmatpush.msra.mxu0 %v260
        %777 = vmatpush.msra.mxu0 %v259
        %778 = vmatpush.msra.mxu0 %v258
        %779 = vmatmul.f32.gmra.mxu0 %v761
        %v780 = vpop.f32.mrf.mxu0
        %v781 = vadd.f32 %v758, %v780
        %782 = vdwg.mxu0
        %v784 = vsel %vm322, %v569, 0
        %786 = vmatpush.msra.mxu0 0.0
        %787 = vmatpush.msra.mxu0 0.0
        %788 = vmatpush.msra.mxu0 0.0
        %789 = vmatpush.msra.mxu0 0.0
        %790 = vmatpush.msra.mxu0 0.0
        %791 = vmatpush.msra.mxu0 0.0
        %792 = vmatpush.msra.mxu0 0.0
        %793 = vmatpush.msra.mxu0 0.0
        %794 = vmatpush.msra.mxu0 0.0
        %795 = vmatpush.msra.mxu0 0.0
        %796 = vmatpush.msra.mxu0 0.0
        %797 = vmatpush.msra.mxu0 0.0
        %798 = vmatpush.msra.mxu0 %v271
        %799 = vmatpush.msra.mxu0 %v270
        %800 = vmatpush.msra.mxu0 %v269
        %801 = vmatpush.msra.mxu0 %v268
        %802 = vmatmul.f32.gmra.mxu0 %v784
        %v803 = vpop.f32.mrf.mxu0
        %v804 = vadd.f32 0.0, %v803
        %805 = vdwg.mxu0
        %v806 = vadd.f32 %v781, %v804
        %v808 = vsel %vm322, %v570, 0
        %810 = vmatpush.msra.mxu0 0.0
        %811 = vmatpush.msra.mxu0 0.0
        %812 = vmatpush.msra.mxu0 0.0
        %813 = vmatpush.msra.mxu0 0.0
        %814 = vmatpush.msra.mxu0 0.0
        %815 = vmatpush.msra.mxu0 0.0
        %816 = vmatpush.msra.mxu0 0.0
        %817 = vmatpush.msra.mxu0 0.0
        %818 = vmatpush.msra.mxu0 0.0
        %819 = vmatpush.msra.mxu0 0.0
        %820 = vmatpush.msra.mxu0 0.0
        %821 = vmatpush.msra.mxu0 0.0
        %822 = vmatpush.msra.mxu0 %v276
        %823 = vmatpush.msra.mxu0 %v275
        %824 = vmatpush.msra.mxu0 %v274
        %825 = vmatpush.msra.mxu0 %v273
        %826 = vmatmul.f32.gmra.mxu0 %v808
        %v827 = vpop.f32.mrf.mxu0
        %v828 = vadd.f32 0.0, %v827
        %829 = vdwg.mxu0
        %v830 = vadd.f32 %v806, %v828
        %v831 = vmul.f32 %v710, %v418
        %v832 = vsub.f32 %v830, %v831
        %v833 = vmul.f32 %v736, %v832
        %v834 = vadd.f32 %v833, %v424
        %835 = vst.msk [vmem:[%s702 + $0x2] sm:$0x3] %vm427, %v834
        %s836 = sand.u32 %s135, 1
        %s837 = scalar_lea.sflag [#allocation4], %s836
        %s838 = sand.u32 %s135, 1
        %s839 = smul.addr %s838, 8
        %s840 = scalar_lea.vmem [#allocation7], %s839
        // Predicated region
        $region45: #{tpu_custom_call.1} parent=35 // pred_check
          %p841 = pneg %p145
        $region46: #{tpu_custom_call.1} parent=35 // pred_check_branch
          %843 = sbr.rel (%p841) target = $region48
        $region47: #{tpu_custom_call.1} parent=35 // pred_region
          %s844 = smul.u32 2, %s26
          %846 = vsyncadd %s837, 0
          %s847 = sadd.s32 %s27, %s844
          %s848 = smul.addr %s847, 4
          %s849 = scalar_lea.hbm %s4, %s848
          %s850 = sshll.u32 %s840, 4
          %s851 = int_to_ptr.vmem [resolvable:$true] %s850
          %s852 = sshll.u32 %s849, 4
          %s853 = int_to_ptr.hbm [resolvable:$true] %s852
          %858 = dma.vmem_to_hbm [thread:$0]  %s851, 128, %s853, %s837, 64, 64, 4
        $region48: #{tpu_custom_call.1} parent=35 // pred_fallthru
          _
      $region36: #{tpu_custom_call.1} parent=5 // pred_fallthru
        _
      %p859 = scmp.le.s32.totalorder 2, %s17
      // Predicated region
      $region49: #{tpu_custom_call.1} parent=5 // pred_check
        %p860 = pneg %p859
      $region50: #{tpu_custom_call.1} parent=5 // pred_check_branch
        %862 = sbr.rel (%p860) target = $region52
      $region51: #{tpu_custom_call.1} parent=5 // pred_region
        %s863 = ssub.s32 %s17, 2
        // Predicated region
        $region53: #{tpu_custom_call.1} parent=51 // pred_check
          %p864 = pneg %p151
        $region54: #{tpu_custom_call.1} parent=51 // pred_check_branch
          %866 = sbr.rel (%p864) target = $region56
        $region55: #{tpu_custom_call.1} parent=51 // pred_region
          %s867 = sand.u32 %s136, 1
          %s868 = scalar_lea.sflag [#allocation4], %s867
          %s869 = sand.u32 %s136, 1
          %s870 = smul.addr %s869, 8
          %s871 = scalar_lea.vmem [#allocation7], %s870
          %873 = dma.done %s868, 128
        $region56: #{tpu_custom_call.1} parent=51 // pred_fallthru
          _
      $region52: #{tpu_custom_call.1} parent=5 // pred_fallthru
        _
    $region6: #{tpu_custom_call.1} parent=1 // loop_footer
      %s21 = sadd.s32 1, %s17
    $region7: #{tpu_custom_call.1} parent=1 // loop_footer_branch
      %16 = sbr.rel target = $region3
    $region8: #{tpu_custom_call.1} parent=1 // loop_exit
      _
    %874 = vsyncpa [#allocation3], 1
    %s875 = scalar_lea.sflag [#allocation3], 1
    %876 = vsyncpa %s875, 1
    %877 = vsyncpa [#allocation6], 1
    %878 = vsyncpa [#allocation4], 1
    %s879 = scalar_lea.sflag [#allocation4], 1
    %880 = vsyncpa %s879, 1

</llo_original>
